<compile_context>
chip_gen: v7x
topology: tpu7x:2x2x1
jax: 0.10.0
libtpu: 0.0.40
codegen_flags: <defaults>
</compile_context>

<pallas_src>
import jax
import jax.numpy as jnp
from jax.experimental import pallas as pl
from jax.experimental.pallas import tpu as pltpu

_VMEM = pl.BlockSpec(memory_space=pltpu.MemorySpace.VMEM)


# ---------------------------------------------------------------------------
# Pallas kernel: fused linear (matmul + bias) = the whole forward of the module
# ---------------------------------------------------------------------------
def _linear_kernel(x_ref, w_ref, b_ref, o_ref):
    # x: (M, K) f32, w: (K, N) f32, b: (1, N) f32 -> o: (M, N) f32.
    # K=5, N=2: unrolled VPU contraction (broadcast outer products), fully f32.
    x = x_ref[...]
    w = w_ref[...]
    k_dim = x.shape[-1]
    acc = b_ref[...] + x[:, 0:1] * w[0:1, :]          # (1,N)+(M,N) -> (M,N)
    for k in range(1, k_dim):                          # static, fully unrolled
        acc = acc + x[:, k:k + 1] * w[k:k + 1, :]
    o_ref[...] = acc.astype(o_ref.dtype)


def linear(x_flat, w_t, b):
    M, K = x_flat.shape
    K2, N = w_t.shape
    assert K == K2
    return pl.pallas_call(
        _linear_kernel,
        out_shape=jax.ShapeDtypeStruct((M, N), x_flat.dtype),
        in_specs=[_VMEM, _VMEM, _VMEM],
        out_specs=_VMEM,
        cost_estimate=pl.CostEstimate(
            flops=2 * M * K * N,
            bytes_accessed=(M * K + K * N + N + M * N) * 4,
            transcendentals=0,
        ),
    )(x_flat, w_t, b.reshape(1, N))


# ---------------------------------------------------------------------------
# Parameters (PyTorch nn.Linear default init: U(-1/sqrt(fan_in), +1/sqrt(fan_in)))
# ---------------------------------------------------------------------------
def init_params(key, input_size, output_size):
    kw, kb = jax.random.split(key)
    bound = 1.0 / float(input_size) ** 0.5
    w = jax.random.uniform(kw, (output_size, input_size), jnp.float32, -bound, bound)
    b = jax.random.uniform(kb, (output_size,), jnp.float32, -bound, bound)
    # Stored pre-transposed to (in, out): the jitted forward never emits an
    # XLA transpose (perf-review item carried over from the previous revision).
    return {"fc_w_t": w.T, "fc_b": b}


@jax.jit
def forward(params, x):
    # nn.Linear acts on the last dim; collapse all leading dims into rows
    # (free reshape, no data movement), run the single fused kernel, reshape back.
    lead = x.shape[:-1]
    k = x.shape[-1]
    out = linear(x.reshape(-1, k), params["fc_w_t"], params["fc_b"])
    # TODO(synk): the original forward also print()s the input/output sizes;
    # that is host-side debugging with no tensor-op / Pallas equivalent.
    return out.reshape(*lead, out.shape[-1])


if __name__ == "__main__":
    input_size, output_size = 5, 2
    key = jax.random.PRNGKey(0)
    pkey, xkey = jax.random.split(key)
    params = init_params(pkey, input_size, output_size)

    # Matches the module's `input = torch.randn(6, 3, 5, 5)`.
    x = jax.random.normal(xkey, (6, 3, 5, 5), jnp.float32)

    out = forward(params, x)
    jax.block_until_ready(out)

    assert out.shape == (6, 3, 5, 2) and out.dtype == jnp.float32
    # Numerical cross-check against an exact-f32 plain-JAX reference of the
    # same Linear (HIGHEST precision so the reference matches true f32 math,
    # like the VPU contraction inside the kernel).
    ref_flat = jnp.dot(
        x.reshape(-1, input_size),
        params["fc_w_t"],
        precision=jax.lax.Precision.HIGHEST,
    ) + params["fc_b"]
    ref = ref_flat.reshape(6, 3, 5, output_size)
    assert jnp.allclose(out, ref, atol=1e-5, rtol=1e-5)
    print("KERNEL_OK")
</pallas_src>

<mosaic_0001>
module attributes {stable_mosaic.version = 11 : i64} {
  func.func @_linear_kernel(%arg0: memref<90x5xf32, #tpu.memory_space<vmem>>, %arg1: memref<5x2xf32, #tpu.memory_space<vmem>>, %arg2: memref<1x2xf32, #tpu.memory_space<vmem>>, %arg3: memref<90x2xf32, #tpu.memory_space<vmem>>) attributes {dimension_semantics = [], scalar_prefetch = 0 : i64, scratch_operands = 0 : i64, tpu.core_type = #tpu.core_type<tc>} {
    %c0 = arith.constant 0 : index
    %c0_0 = arith.constant 0 : index
    %0 = vector.load %arg0[%c0, %c0_0] : memref<90x5xf32, #tpu.memory_space<vmem>>, vector<90x5xf32>
    %c0_1 = arith.constant 0 : index
    %c0_2 = arith.constant 0 : index
    %1 = vector.load %arg1[%c0_1, %c0_2] : memref<5x2xf32, #tpu.memory_space<vmem>>, vector<5x2xf32>
    %c0_3 = arith.constant 0 : index
    %c0_4 = arith.constant 0 : index
    %2 = vector.load %arg2[%c0_3, %c0_4] : memref<1x2xf32, #tpu.memory_space<vmem>>, vector<1x2xf32>
    %3 = vector.extract_strided_slice %0 {offsets = [0, 0], sizes = [90, 1], strides = [1, 1]} : vector<90x5xf32> to vector<90x1xf32>
    %4 = vector.extract_strided_slice %1 {offsets = [0, 0], sizes = [1, 2], strides = [1, 1]} : vector<5x2xf32> to vector<1x2xf32>
    %5 = vector.broadcast %3 : vector<90x1xf32> to vector<90x2xf32>
    %6 = vector.broadcast %4 : vector<1x2xf32> to vector<90x2xf32>
    %7 = arith.mulf %5, %6 : vector<90x2xf32>
    %8 = vector.broadcast %2 : vector<1x2xf32> to vector<90x2xf32>
    %9 = arith.addf %8, %7 : vector<90x2xf32>
    %10 = vector.extract_strided_slice %0 {offsets = [0, 1], sizes = [90, 1], strides = [1, 1]} : vector<90x5xf32> to vector<90x1xf32>
    %11 = vector.extract_strided_slice %1 {offsets = [1, 0], sizes = [1, 2], strides = [1, 1]} : vector<5x2xf32> to vector<1x2xf32>
    %12 = vector.broadcast %10 : vector<90x1xf32> to vector<90x2xf32>
    %13 = vector.broadcast %11 : vector<1x2xf32> to vector<90x2xf32>
    %14 = arith.mulf %12, %13 : vector<90x2xf32>
    %15 = arith.addf %9, %14 : vector<90x2xf32>
    %16 = vector.extract_strided_slice %0 {offsets = [0, 2], sizes = [90, 1], strides = [1, 1]} : vector<90x5xf32> to vector<90x1xf32>
    %17 = vector.extract_strided_slice %1 {offsets = [2, 0], sizes = [1, 2], strides = [1, 1]} : vector<5x2xf32> to vector<1x2xf32>
    %18 = vector.broadcast %16 : vector<90x1xf32> to vector<90x2xf32>
    %19 = vector.broadcast %17 : vector<1x2xf32> to vector<90x2xf32>
    %20 = arith.mulf %18, %19 : vector<90x2xf32>
    %21 = arith.addf %15, %20 : vector<90x2xf32>
    %22 = vector.extract_strided_slice %0 {offsets = [0, 3], sizes = [90, 1], strides = [1, 1]} : vector<90x5xf32> to vector<90x1xf32>
    %23 = vector.extract_strided_slice %1 {offsets = [3, 0], sizes = [1, 2], strides = [1, 1]} : vector<5x2xf32> to vector<1x2xf32>
    %24 = vector.broadcast %22 : vector<90x1xf32> to vector<90x2xf32>
    %25 = vector.broadcast %23 : vector<1x2xf32> to vector<90x2xf32>
    %26 = arith.mulf %24, %25 : vector<90x2xf32>
    %27 = arith.addf %21, %26 : vector<90x2xf32>
    %28 = vector.extract_strided_slice %0 {offsets = [0, 4], sizes = [90, 1], strides = [1, 1]} : vector<90x5xf32> to vector<90x1xf32>
    %29 = vector.extract_strided_slice %1 {offsets = [4, 0], sizes = [1, 2], strides = [1, 1]} : vector<5x2xf32> to vector<1x2xf32>
    %30 = vector.broadcast %28 : vector<90x1xf32> to vector<90x2xf32>
    %31 = vector.broadcast %29 : vector<1x2xf32> to vector<90x2xf32>
    %32 = arith.mulf %30, %31 : vector<90x2xf32>
    %33 = arith.addf %27, %32 : vector<90x2xf32>
    %c0_5 = arith.constant 0 : index
    %c0_6 = arith.constant 0 : index
    %34 = vector.load %arg3[%c0_5, %c0_6] : memref<90x2xf32, #tpu.memory_space<vmem>>, vector<90x2xf32>
    tpu.vector_store %arg3[%c0_5, %c0_6], %33 {strides = array<i32>} : memref<90x2xf32, #tpu.memory_space<vmem>>, vector<90x2xf32>,
    return
  }
}

</mosaic_0001>

<llo_original>
// kernel: forward.1
$region0: #{forward.1}
  #allocation0 [shape = 'u32[]', space=smem, size = 0x4, offset = 0x4, fixed_abs, tag = 'smem constant byte address 0x4 - core index']
  #allocation1 [shape = 'u32[144,128]{1,0:T(1,128)}', space=vmem, size = 0x12000, scoped, tag = 'internal scratch']
  %s0 = inlined_call_operand.vmem [shape: f32[90,5], index: 0, kind: input, shape index: {}]
  %s1 = inlined_call_operand.vmem [shape: f32[5,2], index: 1, kind: input, shape index: {}]
  %s2 = inlined_call_operand.vmem [shape: f32[1,2], index: 2, kind: input, shape index: {}]
  %s3 = inlined_call_operand.vmem [shape: f32[90,2], index: 3, kind: output, shape index: {}]
  %s4 = sld [smem:[#allocation0]]
  $region22: #{forward.1} parent=0
    _
  %s6 = ssub.s32 1, %s4
  %s7 = scalar_select 0, %s6, %s4
  // Predicated region
  $region2: #{forward.1} parent=0 // pred_check
    _
  $region3: #{forward.1} parent=0 // pred_check_branch
    %9 = sbr.rel (0) target = $region5
  $region4: #{forward.1} parent=0 // pred_region
    _
  $region5: #{forward.1} parent=0 // pred_fallthru
    _
  // Predicated region
  $region6: #{forward.1} parent=0 // pred_check
    _
  $region7: #{forward.1} parent=0 // pred_check_branch
    %11 = sbr.rel (0) target = $region9
  $region8: #{forward.1} parent=0 // pred_region
    _
  $region9: #{forward.1} parent=0 // pred_fallthru
    _
  // Predicated region
  $region10: #{forward.1} parent=0 // pred_check
    _
  $region11: #{forward.1} parent=0 // pred_check_branch
    %13 = sbr.rel (0) target = $region13
  $region12: #{forward.1} parent=0 // pred_region
    _
  $region13: #{forward.1} parent=0 // pred_fallthru
    _
  %v14 = vld [vmem:[%s0] sm:$0xff]
  %v15 = vld [vmem:[%s0 + $0x8] sm:$0xff]
  %v16 = vld [vmem:[%s0 + $0x10] sm:$0xff]
  %v17 = vld [vmem:[%s0 + $0x18] sm:$0xff]
  %v18 = vld [vmem:[%s0 + $0x20] sm:$0xff]
  %v19 = vld [vmem:[%s0 + $0x28] sm:$0xff]
  %v20 = vld [vmem:[%s0 + $0x30] sm:$0xff]
  %v21 = vld [vmem:[%s0 + $0x38] sm:$0xff]
  %v22 = vld [vmem:[%s0 + $0x40] sm:$0xff]
  %v23 = vld [vmem:[%s0 + $0x48] sm:$0xff]
  %v24 = vld [vmem:[%s0 + $0x50] sm:$0xff]
  %v25 = vld [vmem:[%s0 + $0x58] sm:$0x3]
  %v26 = vld [vmem:[%s1] sm:$0x1f]
  %v27 = vld [vmem:[%s2] sm:$0x1]
  %29 = vset.pattern.permute.xlu0 0
  %30 = vperm.xlu0 %29, %v14
  %v31 = vpop.permute.xlu0 %30
  %34 = vset.pattern.permute.xlu0 0
  %35 = vperm.xlu0 %34, %v15
  %v36 = vpop.permute.xlu0 %35
  %39 = vset.pattern.permute.xlu0 0
  %40 = vperm.xlu0 %39, %v16
  %v41 = vpop.permute.xlu0 %40
  %44 = vset.pattern.permute.xlu0 0
  %45 = vperm.xlu0 %44, %v17
  %v46 = vpop.permute.xlu0 %45
  %49 = vset.pattern.permute.xlu0 0
  %50 = vperm.xlu0 %49, %v18
  %v51 = vpop.permute.xlu0 %50
  %54 = vset.pattern.permute.xlu0 0
  %55 = vperm.xlu0 %54, %v19
  %v56 = vpop.permute.xlu0 %55
  %59 = vset.pattern.permute.xlu0 0
  %60 = vperm.xlu0 %59, %v20
  %v61 = vpop.permute.xlu0 %60
  %64 = vset.pattern.permute.xlu0 0
  %65 = vperm.xlu0 %64, %v21
  %v66 = vpop.permute.xlu0 %65
  %69 = vset.pattern.permute.xlu0 0
  %70 = vperm.xlu0 %69, %v22
  %v71 = vpop.permute.xlu0 %70
  %74 = vset.pattern.permute.xlu0 0
  %75 = vperm.xlu0 %74, %v23
  %v76 = vpop.permute.xlu0 %75
  %79 = vset.pattern.permute.xlu0 0
  %80 = vperm.xlu0 %79, %v24
  %v81 = vpop.permute.xlu0 %80
  %84 = vset.pattern.permute.xlu0 0
  %85 = vperm.xlu0 %84, %v25
  %v86 = vpop.permute.xlu0 %85
  %v88 = vlaneseq
  %v89 = vshrl.u32 %v88, 7
  %v90 = vsub.s32 0, %v89
  %v91 = vrot.slane %v26, %v90
  %v92 = vmul.f32 %v31, %v91
  %v93 = vmul.f32 %v36, %v91
  %v94 = vmul.f32 %v41, %v91
  %v95 = vmul.f32 %v46, %v91
  %v96 = vmul.f32 %v51, %v91
  %v97 = vmul.f32 %v56, %v91
  %v98 = vmul.f32 %v61, %v91
  %v99 = vmul.f32 %v66, %v91
  %v100 = vmul.f32 %v71, %v91
  %v101 = vmul.f32 %v76, %v91
  %v102 = vmul.f32 %v81, %v91
  %v103 = vmul.f32 %v86, %v91
  %v105 = vlaneseq
  %v106 = vshrl.u32 %v105, 7
  %v107 = vsub.s32 0, %v106
  %v108 = vrot.slane %v27, %v107
  %v110 = vadd.f32 %v108, %v92
  %v111 = vadd.f32 %v108, %v93
  %v112 = vadd.f32 %v108, %v94
  %v113 = vadd.f32 %v108, %v95
  %v114 = vadd.f32 %v108, %v96
  %v115 = vadd.f32 %v108, %v97
  %v116 = vadd.f32 %v108, %v98
  %v117 = vadd.f32 %v108, %v99
  %v118 = vadd.f32 %v108, %v100
  %v119 = vadd.f32 %v108, %v101
  %v120 = vadd.f32 %v108, %v102
  %v121 = vadd.f32 %v108, %v103
  %122 = vset.pattern.permute.xlu0 1
  %123 = vperm.xlu0 %122, %v14
  %v124 = vpop.permute.xlu0 %123
  %126 = vset.pattern.permute.xlu0 1
  %127 = vperm.xlu0 %126, %v15
  %v128 = vpop.permute.xlu0 %127
  %130 = vset.pattern.permute.xlu0 1
  %131 = vperm.xlu0 %130, %v16
  %v132 = vpop.permute.xlu0 %131
  %134 = vset.pattern.permute.xlu0 1
  %135 = vperm.xlu0 %134, %v17
  %v136 = vpop.permute.xlu0 %135
  %138 = vset.pattern.permute.xlu0 1
  %139 = vperm.xlu0 %138, %v18
  %v140 = vpop.permute.xlu0 %139
  %142 = vset.pattern.permute.xlu0 1
  %143 = vperm.xlu0 %142, %v19
  %v144 = vpop.permute.xlu0 %143
  %146 = vset.pattern.permute.xlu0 1
  %147 = vperm.xlu0 %146, %v20
  %v148 = vpop.permute.xlu0 %147
  %150 = vset.pattern.permute.xlu0 1
  %151 = vperm.xlu0 %150, %v21
  %v152 = vpop.permute.xlu0 %151
  %154 = vset.pattern.permute.xlu0 1
  %155 = vperm.xlu0 %154, %v22
  %v156 = vpop.permute.xlu0 %155
  %158 = vset.pattern.permute.xlu0 1
  %159 = vperm.xlu0 %158, %v23
  %v160 = vpop.permute.xlu0 %159
  %162 = vset.pattern.permute.xlu0 1
  %163 = vperm.xlu0 %162, %v24
  %v164 = vpop.permute.xlu0 %163
  %166 = vset.pattern.permute.xlu0 1
  %167 = vperm.xlu0 %166, %v25
  %v168 = vpop.permute.xlu0 %167
  %v170 = vlaneseq
  %v171 = vshrl.u32 %v170, 7
  %v172 = vsub.s32 1, %v171
  %v173 = vrot.slane %v26, %v172
  %v174 = vmul.f32 %v124, %v173
  %v175 = vmul.f32 %v128, %v173
  %v176 = vmul.f32 %v132, %v173
  %v177 = vmul.f32 %v136, %v173
  %v178 = vmul.f32 %v140, %v173
  %v179 = vmul.f32 %v144, %v173
  %v180 = vmul.f32 %v148, %v173
  %v181 = vmul.f32 %v152, %v173
  %v182 = vmul.f32 %v156, %v173
  %v183 = vmul.f32 %v160, %v173
  %v184 = vmul.f32 %v164, %v173
  %v185 = vmul.f32 %v168, %v173
  %v186 = vadd.f32 %v110, %v174
  %v187 = vadd.f32 %v111, %v175
  %v188 = vadd.f32 %v112, %v176
  %v189 = vadd.f32 %v113, %v177
  %v190 = vadd.f32 %v114, %v178
  %v191 = vadd.f32 %v115, %v179
  %v192 = vadd.f32 %v116, %v180
  %v193 = vadd.f32 %v117, %v181
  %v194 = vadd.f32 %v118, %v182
  %v195 = vadd.f32 %v119, %v183
  %v196 = vadd.f32 %v120, %v184
  %v197 = vadd.f32 %v121, %v185
  %198 = vset.pattern.permute.xlu0 2
  %199 = vperm.xlu0 %198, %v14
  %v200 = vpop.permute.xlu0 %199
  %202 = vset.pattern.permute.xlu0 2
  %203 = vperm.xlu0 %202, %v15
  %v204 = vpop.permute.xlu0 %203
  %206 = vset.pattern.permute.xlu0 2
  %207 = vperm.xlu0 %206, %v16
  %v208 = vpop.permute.xlu0 %207
  %210 = vset.pattern.permute.xlu0 2
  %211 = vperm.xlu0 %210, %v17
  %v212 = vpop.permute.xlu0 %211
  %214 = vset.pattern.permute.xlu0 2
  %215 = vperm.xlu0 %214, %v18
  %v216 = vpop.permute.xlu0 %215
  %218 = vset.pattern.permute.xlu0 2
  %219 = vperm.xlu0 %218, %v19
  %v220 = vpop.permute.xlu0 %219
  %222 = vset.pattern.permute.xlu0 2
  %223 = vperm.xlu0 %222, %v20
  %v224 = vpop.permute.xlu0 %223
  %226 = vset.pattern.permute.xlu0 2
  %227 = vperm.xlu0 %226, %v21
  %v228 = vpop.permute.xlu0 %227
  %230 = vset.pattern.permute.xlu0 2
  %231 = vperm.xlu0 %230, %v22
  %v232 = vpop.permute.xlu0 %231
  %234 = vset.pattern.permute.xlu0 2
  %235 = vperm.xlu0 %234, %v23
  %v236 = vpop.permute.xlu0 %235
  %238 = vset.pattern.permute.xlu0 2
  %239 = vperm.xlu0 %238, %v24
  %v240 = vpop.permute.xlu0 %239
  %242 = vset.pattern.permute.xlu0 2
  %243 = vperm.xlu0 %242, %v25
  %v244 = vpop.permute.xlu0 %243
  %v246 = vlaneseq
  %v247 = vshrl.u32 %v246, 7
  %v248 = vsub.s32 2, %v247
  %v249 = vrot.slane %v26, %v248
  %v250 = vmul.f32 %v200, %v249
  %v251 = vmul.f32 %v204, %v249
  %v252 = vmul.f32 %v208, %v249
  %v253 = vmul.f32 %v212, %v249
  %v254 = vmul.f32 %v216, %v249
  %v255 = vmul.f32 %v220, %v249
  %v256 = vmul.f32 %v224, %v249
  %v257 = vmul.f32 %v228, %v249
  %v258 = vmul.f32 %v232, %v249
  %v259 = vmul.f32 %v236, %v249
  %v260 = vmul.f32 %v240, %v249
  %v261 = vmul.f32 %v244, %v249
  %v262 = vadd.f32 %v186, %v250
  %v263 = vadd.f32 %v187, %v251
  %v264 = vadd.f32 %v188, %v252
  %v265 = vadd.f32 %v189, %v253
  %v266 = vadd.f32 %v190, %v254
  %v267 = vadd.f32 %v191, %v255
  %v268 = vadd.f32 %v192, %v256
  %v269 = vadd.f32 %v193, %v257
  %v270 = vadd.f32 %v194, %v258
  %v271 = vadd.f32 %v195, %v259
  %v272 = vadd.f32 %v196, %v260
  %v273 = vadd.f32 %v197, %v261
  %274 = vset.pattern.permute.xlu0 3
  %275 = vperm.xlu0 %274, %v14
  %v276 = vpop.permute.xlu0 %275
  %278 = vset.pattern.permute.xlu0 3
  %279 = vperm.xlu0 %278, %v15
  %v280 = vpop.permute.xlu0 %279
  %282 = vset.pattern.permute.xlu0 3
  %283 = vperm.xlu0 %282, %v16
  %v284 = vpop.permute.xlu0 %283
  %286 = vset.pattern.permute.xlu0 3
  %287 = vperm.xlu0 %286, %v17
  %v288 = vpop.permute.xlu0 %287
  %290 = vset.pattern.permute.xlu0 3
  %291 = vperm.xlu0 %290, %v18
  %v292 = vpop.permute.xlu0 %291
  %294 = vset.pattern.permute.xlu0 3
  %295 = vperm.xlu0 %294, %v19
  %v296 = vpop.permute.xlu0 %295
  %298 = vset.pattern.permute.xlu0 3
  %299 = vperm.xlu0 %298, %v20
  %v300 = vpop.permute.xlu0 %299
  %302 = vset.pattern.permute.xlu0 3
  %303 = vperm.xlu0 %302, %v21
  %v304 = vpop.permute.xlu0 %303
  %306 = vset.pattern.permute.xlu0 3
  %307 = vperm.xlu0 %306, %v22
  %v308 = vpop.permute.xlu0 %307
  %310 = vset.pattern.permute.xlu0 3
  %311 = vperm.xlu0 %310, %v23
  %v312 = vpop.permute.xlu0 %311
  %314 = vset.pattern.permute.xlu0 3
  %315 = vperm.xlu0 %314, %v24
  %v316 = vpop.permute.xlu0 %315
  %318 = vset.pattern.permute.xlu0 3
  %319 = vperm.xlu0 %318, %v25
  %v320 = vpop.permute.xlu0 %319
  %v322 = vlaneseq
  %v323 = vshrl.u32 %v322, 7
  %v324 = vsub.s32 3, %v323
  %v325 = vrot.slane %v26, %v324
  %v326 = vmul.f32 %v276, %v325
  %v327 = vmul.f32 %v280, %v325
  %v328 = vmul.f32 %v284, %v325
  %v329 = vmul.f32 %v288, %v325
  %v330 = vmul.f32 %v292, %v325
  %v331 = vmul.f32 %v296, %v325
  %v332 = vmul.f32 %v300, %v325
  %v333 = vmul.f32 %v304, %v325
  %v334 = vmul.f32 %v308, %v325
  %v335 = vmul.f32 %v312, %v325
  %v336 = vmul.f32 %v316, %v325
  %v337 = vmul.f32 %v320, %v325
  %v338 = vadd.f32 %v262, %v326
  %v339 = vadd.f32 %v263, %v327
  %v340 = vadd.f32 %v264, %v328
  %v341 = vadd.f32 %v265, %v329
  %v342 = vadd.f32 %v266, %v330
  %v343 = vadd.f32 %v267, %v331
  %v344 = vadd.f32 %v268, %v332
  %v345 = vadd.f32 %v269, %v333
  %v346 = vadd.f32 %v270, %v334
  %v347 = vadd.f32 %v271, %v335
  %v348 = vadd.f32 %v272, %v336
  %v349 = vadd.f32 %v273, %v337
  %350 = vset.pattern.permute.xlu0 4
  %351 = vperm.xlu0 %350, %v14
  %v352 = vpop.permute.xlu0 %351
  %354 = vset.pattern.permute.xlu0 4
  %355 = vperm.xlu0 %354, %v15
  %v356 = vpop.permute.xlu0 %355
  %358 = vset.pattern.permute.xlu0 4
  %359 = vperm.xlu0 %358, %v16
  %v360 = vpop.permute.xlu0 %359
  %362 = vset.pattern.permute.xlu0 4
  %363 = vperm.xlu0 %362, %v17
  %v364 = vpop.permute.xlu0 %363
  %366 = vset.pattern.permute.xlu0 4
  %367 = vperm.xlu0 %366, %v18
  %v368 = vpop.permute.xlu0 %367
  %370 = vset.pattern.permute.xlu0 4
  %371 = vperm.xlu0 %370, %v19
  %v372 = vpop.permute.xlu0 %371
  %374 = vset.pattern.permute.xlu0 4
  %375 = vperm.xlu0 %374, %v20
  %v376 = vpop.permute.xlu0 %375
  %378 = vset.pattern.permute.xlu0 4
  %379 = vperm.xlu0 %378, %v21
  %v380 = vpop.permute.xlu0 %379
  %382 = vset.pattern.permute.xlu0 4
  %383 = vperm.xlu0 %382, %v22
  %v384 = vpop.permute.xlu0 %383
  %386 = vset.pattern.permute.xlu0 4
  %387 = vperm.xlu0 %386, %v23
  %v388 = vpop.permute.xlu0 %387
  %390 = vset.pattern.permute.xlu0 4
  %391 = vperm.xlu0 %390, %v24
  %v392 = vpop.permute.xlu0 %391
  %394 = vset.pattern.permute.xlu0 4
  %395 = vperm.xlu0 %394, %v25
  %v396 = vpop.permute.xlu0 %395
  %v398 = vlaneseq
  %v399 = vshrl.u32 %v398, 7
  %v400 = vsub.s32 4, %v399
  %v401 = vrot.slane %v26, %v400
  %v402 = vmul.f32 %v352, %v401
  %v403 = vmul.f32 %v356, %v401
  %v404 = vmul.f32 %v360, %v401
  %v405 = vmul.f32 %v364, %v401
  %v406 = vmul.f32 %v368, %v401
  %v407 = vmul.f32 %v372, %v401
  %v408 = vmul.f32 %v376, %v401
  %v409 = vmul.f32 %v380, %v401
  %v410 = vmul.f32 %v384, %v401
  %v411 = vmul.f32 %v388, %v401
  %v412 = vmul.f32 %v392, %v401
  %v413 = vmul.f32 %v396, %v401
  %v414 = vadd.f32 %v338, %v402
  %v415 = vadd.f32 %v339, %v403
  %v416 = vadd.f32 %v340, %v404
  %v417 = vadd.f32 %v341, %v405
  %v418 = vadd.f32 %v342, %v406
  %v419 = vadd.f32 %v343, %v407
  %v420 = vadd.f32 %v344, %v408
  %v421 = vadd.f32 %v345, %v409
  %v422 = vadd.f32 %v346, %v410
  %v423 = vadd.f32 %v347, %v411
  %v424 = vadd.f32 %v348, %v412
  %v425 = vadd.f32 %v349, %v413
  %vm426 = vcmask 15360
  %427 = vst.msk [vmem:[%s3] sm:$0xff] %vm426, %v414
  %428 = vst.msk [vmem:[%s3 + $0x8] sm:$0xff] %vm426, %v415
  %429 = vst.msk [vmem:[%s3 + $0x10] sm:$0xff] %vm426, %v416
  %430 = vst.msk [vmem:[%s3 + $0x18] sm:$0xff] %vm426, %v417
  %431 = vst.msk [vmem:[%s3 + $0x20] sm:$0xff] %vm426, %v418
  %432 = vst.msk [vmem:[%s3 + $0x28] sm:$0xff] %vm426, %v419
  %433 = vst.msk [vmem:[%s3 + $0x30] sm:$0xff] %vm426, %v420
  %434 = vst.msk [vmem:[%s3 + $0x38] sm:$0xff] %vm426, %v421
  %435 = vst.msk [vmem:[%s3 + $0x40] sm:$0xff] %vm426, %v422
  %436 = vst.msk [vmem:[%s3 + $0x48] sm:$0xff] %vm426, %v423
  %437 = vst.msk [vmem:[%s3 + $0x50] sm:$0xff] %vm426, %v424
  %vm438 = vcmask 9216
  %439 = vst.msk [vmem:[%s3 + $0x58] sm:$0x3] %vm438, %v425
  // Predicated region
  $region14: #{forward.1} parent=0 // pred_check
    _
  $region15: #{forward.1} parent=0 // pred_check_branch
    %441 = sbr.rel (0) target = $region17
  $region16: #{forward.1} parent=0 // pred_region
    _
  $region17: #{forward.1} parent=0 // pred_fallthru
    _
  // Predicated region
  $region18: #{forward.1} parent=0 // pred_check
    _
  $region19: #{forward.1} parent=0 // pred_check_branch
    %443 = sbr.rel (0) target = $region21
  $region20: #{forward.1} parent=0 // pred_region
    _
  $region21: #{forward.1} parent=0 // pred_fallthru
    _

</llo_original>
